<compile_context>
chip_gen: v6e
topology: v6e:2x2x1
jax: 0.10.0
libtpu: 0.0.40
codegen_flags: <defaults>
</compile_context>

<pallas_src>
import functools

import jax
import jax.numpy as jnp
from jax import lax
from jax.experimental import pallas as pl
from jax.experimental.pallas import tpu as pltpu


def _round_up(x, m):
    return (x + m - 1) // m * m


def _vmem_limit_bytes():
    """Generation-aware scoped-VMEM limit (v5e/v6e: 64 MiB, v7x: 32 MiB)."""
    cap = 64 * 1024 * 1024          # conservative default = v7x per-core VMEM
    try:
        info = pltpu.get_tpu_info()
        got = getattr(info, "vmem_capacity_bytes", None)
        if got:
            cap = int(got)
    except Exception:
        pass
    # use at most half of physical VMEM for this kernel, never more than 64 MiB
    return max(32 * 1024 * 1024, min(cap // 2, 64 * 1024 * 1024))


def _masked_ce_kernel(x_ref, t_ref, out_ref, *, num_classes, n_rows, tile_rows):
    """One grid step over a (tile_rows, C) block of logits.

    x_ref:   (tile_rows, C)  logits in natural row-major layout, any float dtype
    t_ref:   (1, tile_rows)  int32 targets, lane-dense
    out_ref: (1, 8, 128)     f32 partials: sublane 0 = loss sum, sublane 1 = count
    """
    i = pl.program_id(0)

    # Single in-kernel transpose to the lane-dense (C, tile_rows) layout:
    # samples on the 128-lane axis, classes on sublanes (C ~ 10 << 128).
    logits = x_ref[...].astype(jnp.float32).T                  # (C, TR)
    tgt = t_ref[...]                                           # (1, TR)

    # target validity + remainder masking (last block may run past N)
    valid = (tgt >= 0) & (tgt < num_classes)                   # (1, TR)
    row = i * tile_rows + lax.broadcasted_iota(jnp.int32, tgt.shape, 1)
    valid = valid & (row < n_rows)

    # numerically stable logsumexp over the class (sublane) axis
    m = jnp.max(logits, axis=0, keepdims=True)                 # (1, TR)
    lse = m + jnp.log(jnp.sum(jnp.exp(logits - m), axis=0, keepdims=True))

    # target-logit gather as a select-reduce; keep it a SELECT — garbage in the
    # masked / out-of-range columns must never reach the sum via a multiply.
    cls_ids = lax.broadcasted_iota(jnp.int32, logits.shape, 0)  # (C, TR)
    picked = jnp.sum(jnp.where(cls_ids == tgt, logits, 0.0),
                     axis=0, keepdims=True)                     # (1, TR)

    loss = jnp.where(valid, lse - picked, 0.0)                  # (1, TR)

    s = jnp.sum(loss)                                           # partial loss sum
    c = jnp.sum(valid.astype(jnp.float32))                      # partial count (exact: TR < 2^24)

    # One full (8, 128) lane-dense store per step: sum -> sublane 0, count -> sublane 1.
    sub = lax.broadcasted_iota(jnp.int32, (8, 128), 0)
    blk = jnp.where(sub == 0, s, jnp.where(sub == 1, c, 0.0))
    out_ref[...] = blk.reshape(1, 8, 128)


def masked_cross_entropy_loss(logits, targets, num_classes, *, tile_rows=None):
    """logits: (N, C) float, targets: (N,) int -> scalar float32 masked-mean CE."""
    N, C = logits.shape
    vmem_limit = _vmem_limit_bytes()

    if tile_rows is None:
        # The (tile_rows, C) VMEM block is lane-padded to round_up(C, 128) lanes;
        # give the double-buffered logits stream ~half the scoped VMEM limit
        # (rest: targets, the transposed temp, exp/log intermediates).
        itemsize = jnp.dtype(logits.dtype).itemsize
        padded_row_bytes = _round_up(C, 128) * itemsize
        tile_rows = (vmem_limit // 4) // padded_row_bytes

    # Keep >= 2 tiles when there is enough work so v7x's two TensorCores both
    # get grid steps (the grid axis is marked "parallel").
    if N >= 2 * 128:
        tile_rows = min(tile_rows, _round_up(pl.cdiv(N, 2), 128))
    # Targets sit on the lane axis -> tile_rows must be a multiple of 128 unless
    # a single block covers all of N.
    tile_rows = max(128, (tile_rows // 128) * 128)
    if tile_rows >= N:
        tile_rows = N
    num_tiles = pl.cdiv(N, tile_rows)

    # Tiny, lane-dense targets view (no transpose of the big logits array).
    targets2d = targets.astype(jnp.int32).reshape(1, N)        # (1, N)

    kernel = functools.partial(_masked_ce_kernel, num_classes=num_classes,
                               n_rows=N, tile_rows=tile_rows)

    parts = pl.pallas_call(
        kernel,
        out_shape=jax.ShapeDtypeStruct((num_tiles, 8, 128), jnp.float32),
        grid_spec=pltpu.PrefetchScalarGridSpec(
            num_scalar_prefetch=0,
            grid=(num_tiles,),
            in_specs=[
                # logits stay in their natural (N, C) layout & dtype (bf16 inputs
                # are streamed as bf16 and upcast in-kernel).  Sweep
                # pipeline_mode=pl.Buffered(3) here only if profiles still show
                # exposed DMA between steps.
                pl.BlockSpec((tile_rows, C), lambda i: (i, 0)),
                pl.BlockSpec((1, tile_rows), lambda i: (0, i)),
            ],
            out_specs=pl.BlockSpec((1, 8, 128), lambda i: (i, 0, 0)),
        ),
        compiler_params=pltpu.CompilerParams(
            dimension_semantics=("parallel",),     # lets v7x's 2 TCs split the grid
            vmem_limit_bytes=vmem_limit),
    )(logits, targets2d)

    total = jnp.sum(parts[:, 0, 0])
    count = jnp.sum(parts[:, 1, 0].astype(jnp.int32))   # exact integer count
    # The PyTorch module returns 0.0 when there are no valid targets.
    return jnp.where(count > 0,
                     total / jnp.maximum(count.astype(jnp.float32), 1.0),
                     jnp.float32(0.0))


def _reference(logits, targets, num_classes):
    valid = (targets >= 0) & (targets < num_classes)
    if int(valid.sum()) == 0:
        return jnp.float32(0.0)
    x = logits[valid]
    t = targets[valid]
    lse = jax.nn.logsumexp(x, axis=-1)
    picked = jnp.take_along_axis(x, t[:, None], axis=-1)[:, 0]
    return jnp.mean(lse - picked)


if __name__ == "__main__":
    key = jax.random.PRNGKey(0)
    N, C = 32, 10          # batch of 32 samples, 10 classes
    k1, k2, k3, k4 = jax.random.split(key, 4)
    logits = jax.random.normal(k1, (N, C), dtype=jnp.float32)
    # targets in [-1, C]: some entries invalid (-1 or == C) to exercise the mask
    targets = jax.random.randint(k2, (N,), -1, C + 1, dtype=jnp.int32)

    out = jax.block_until_ready(masked_cross_entropy_loss(logits, targets, num_classes=C))
    ref = _reference(logits, targets, C)
    assert jnp.allclose(out, ref, rtol=1e-5, atol=1e-5), (out, ref)

    # all-invalid branch returns 0.0
    bad_targets = -jnp.ones((N,), dtype=jnp.int32)
    out0 = jax.block_until_ready(
        masked_cross_entropy_loss(logits, bad_targets, num_classes=C))
    assert out0 == 0.0

    # multi-tile path with a ragged remainder (exercises OOB row masking)
    N2 = 300
    logits2 = jax.random.normal(k3, (N2, C), dtype=jnp.float32)
    targets2 = jax.random.randint(k4, (N2,), -1, C + 1, dtype=jnp.int32)
    out2 = jax.block_until_ready(
        masked_cross_entropy_loss(logits2, targets2, num_classes=C, tile_rows=128))
    ref2 = _reference(logits2, targets2, C)
    assert jnp.allclose(out2, ref2, rtol=1e-5, atol=1e-5), (out2, ref2)

    print("KERNEL_OK")
</pallas_src>

<mosaic_0001>
module attributes {stable_mosaic.version = 11 : i64} {
  func.func @_masked_ce_kernel(%arg0: i32, %arg1: memref<32x10xf32, #tpu.memory_space<vmem>>, %arg2: memref<1x32xi32, #tpu.memory_space<vmem>>, %arg3: memref<1x8x128xf32, #tpu.memory_space<vmem>>) attributes {dimension_semantics = [#tpu.dimension_semantics<parallel>], iteration_bounds = array<i64: 1>, scalar_prefetch = 0 : i64, scratch_operands = 0 : i64, tpu.core_type = #tpu.core_type<tc>, window_params = [{transform_indices = @transform_0, window_bounds = array<i64: 32, 10>}, {transform_indices = @transform_1, window_bounds = array<i64: 1, 32>}, {transform_indices = @transform_2, window_bounds = array<i64: 1, 8, 128>}]} {
    %c0 = arith.constant 0 : index
    %c0_0 = arith.constant 0 : index
    %0 = vector.load %arg1[%c0, %c0_0] : memref<32x10xf32, #tpu.memory_space<vmem>>, vector<32x10xf32>
    %1 = tpu.transpose %0, [1, 0] : vector<32x10xf32> -> vector<10x32xf32>
    %c0_1 = arith.constant 0 : index
    %c0_2 = arith.constant 0 : index
    %2 = vector.load %arg2[%c0_1, %c0_2] : memref<1x32xi32, #tpu.memory_space<vmem>>, vector<1x32xi32>
    %c0_i32 = arith.constant 0 : i32
    %3 = vector.broadcast %c0_i32 : i32 to vector<1x32xi32>
    %4 = arith.cmpi sge, %2, %3 : vector<1x32xi32>
    %c10_i32 = arith.constant 10 : i32
    %5 = vector.broadcast %c10_i32 : i32 to vector<1x32xi32>
    %6 = arith.cmpi slt, %2, %5 : vector<1x32xi32>
    %7 = arith.andi %4, %6 : vector<1x32xi1>
    %c32_i32 = arith.constant 32 : i32
    %8 = arith.muli %arg0, %c32_i32 : i32
    %9 = tpu.iota {dimensions = array<i32: 1>} : vector<1x32xi32>
    %10 = vector.broadcast %8 : i32 to vector<1x32xi32>
    %11 = arith.addi %10, %9 : vector<1x32xi32>
    %c32_i32_3 = arith.constant 32 : i32
    %12 = vector.broadcast %c32_i32_3 : i32 to vector<1x32xi32>
    %13 = arith.cmpi slt, %11, %12 : vector<1x32xi32>
    %14 = arith.andi %7, %13 : vector<1x32xi1>
    %cst = arith.constant dense<0xFF800000> : vector<32xf32>
    %15 = vector.multi_reduction <maximumf>, %1, %cst [0] : vector<10x32xf32> to vector<32xf32>
    %16 = vector.shape_cast %15 : vector<32xf32> to vector<1x32xf32>
    %17 = vector.broadcast %16 : vector<1x32xf32> to vector<10x32xf32>
    %18 = arith.subf %1, %17 : vector<10x32xf32>
    %19 = math.exp %18 : vector<10x32xf32>
    %cst_4 = arith.constant dense<0.000000e+00> : vector<32xf32>
    %20 = vector.multi_reduction <add>, %19, %cst_4 [0] : vector<10x32xf32> to vector<32xf32>
    %21 = vector.shape_cast %20 : vector<32xf32> to vector<1x32xf32>
    %22 = math.log %21 : vector<1x32xf32>
    %23 = arith.addf %16, %22 : vector<1x32xf32>
    %24 = tpu.iota {dimensions = array<i32: 0>} : vector<10x32xi32>
    %25 = vector.broadcast %2 : vector<1x32xi32> to vector<10x32xi32>
    %26 = arith.cmpi eq, %24, %25 : vector<10x32xi32>
    %cst_5 = arith.constant 0.000000e+00 : f32
    %27 = vector.broadcast %cst_5 : f32 to vector<10x32xf32>
    %28 = arith.select %26, %1, %27 : vector<10x32xi1>, vector<10x32xf32>
    %cst_6 = arith.constant dense<0.000000e+00> : vector<32xf32>
    %29 = vector.multi_reduction <add>, %28, %cst_6 [0] : vector<10x32xf32> to vector<32xf32>
    %30 = vector.shape_cast %29 : vector<32xf32> to vector<1x32xf32>
    %31 = arith.subf %23, %30 : vector<1x32xf32>
    %cst_7 = arith.constant 0.000000e+00 : f32
    %32 = vector.broadcast %cst_7 : f32 to vector<1x32xf32>
    %33 = arith.select %14, %31, %32 : vector<1x32xi1>, vector<1x32xf32>
    %34 = vector.shape_cast %33 : vector<1x32xf32> to vector<1x1x32xf32>
    %cst_8 = arith.constant dense<0.000000e+00> : vector<1xf32>
    %35 = vector.multi_reduction <add>, %34, %cst_8 [1, 2] : vector<1x1x32xf32> to vector<1xf32>
    %36 = vector.shape_cast %35 : vector<1xf32> to vector<1x1x1xf32>
    %37 = vector.extract %36[0, 0, 0] : f32 from vector<1x1x1xf32>
    %38 = arith.extui %14 : vector<1x32xi1> to vector<1x32xi32>
    %39 = arith.sitofp %38 : vector<1x32xi32> to vector<1x32xf32>
    %40 = vector.shape_cast %39 : vector<1x32xf32> to vector<1x1x32xf32>
    %cst_9 = arith.constant dense<0.000000e+00> : vector<1xf32>
    %41 = vector.multi_reduction <add>, %40, %cst_9 [1, 2] : vector<1x1x32xf32> to vector<1xf32>
    %42 = vector.shape_cast %41 : vector<1xf32> to vector<1x1x1xf32>
    %43 = vector.extract %42[0, 0, 0] : f32 from vector<1x1x1xf32>
    %44 = tpu.iota {dimensions = array<i32: 0>} : vector<8x128xi32>
    %c0_i32_10 = arith.constant 0 : i32
    %45 = vector.broadcast %c0_i32_10 : i32 to vector<8x128xi32>
    %46 = arith.cmpi eq, %44, %45 : vector<8x128xi32>
    %c1_i32 = arith.constant 1 : i32
    %47 = vector.broadcast %c1_i32 : i32 to vector<8x128xi32>
    %48 = arith.cmpi eq, %44, %47 : vector<8x128xi32>
    %cst_11 = arith.constant 0.000000e+00 : f32
    %49 = vector.broadcast %43 : f32 to vector<8x128xf32>
    %50 = vector.broadcast %cst_11 : f32 to vector<8x128xf32>
    %51 = arith.select %48, %49, %50 : vector<8x128xi1>, vector<8x128xf32>
    %52 = vector.broadcast %37 : f32 to vector<8x128xf32>
    %53 = arith.select %46, %52, %51 : vector<8x128xi1>, vector<8x128xf32>
    %54 = vector.shape_cast %53 : vector<8x128xf32> to vector<1x8x128xf32>
    %c0_12 = arith.constant 0 : index
    %c0_13 = arith.constant 0 : index
    %c0_14 = arith.constant 0 : index
    %55 = vector.load %arg3[%c0_12, %c0_13, %c0_14] : memref<1x8x128xf32, #tpu.memory_space<vmem>>, vector<1x8x128xf32>
    tpu.vector_store %arg3[%c0_12, %c0_13, %c0_14], %54 {strides = array<i32>} : memref<1x8x128xf32, #tpu.memory_space<vmem>>, vector<1x8x128xf32>,
    return
  }
  func.func @transform_0(%arg0: i32) -> (i32, i32) {
    %c0_i32 = arith.constant 0 : i32
    %c0_i32_0 = arith.constant 0 : i32
    return %arg0, %c0_i32 : i32, i32
  }
  func.func @transform_1(%arg0: i32) -> (i32, i32) {
    %c0_i32 = arith.constant 0 : i32
    %c0_i32_0 = arith.constant 0 : i32
    return %c0_i32, %arg0 : i32, i32
  }
  func.func @transform_2(%arg0: i32) -> (i32, i32, i32) {
    %c0_i32 = arith.constant 0 : i32
    %c0_i32_0 = arith.constant 0 : i32
    %c0_i32_1 = arith.constant 0 : i32
    return %arg0, %c0_i32, %c0_i32_0 : i32, i32, i32
  }
}

</mosaic_0001>

<llo_original>
// kernel: tpu_custom_call.1
$region0: #{tpu_custom_call.1}
  #allocation0 [shape = 'u32[]', space=smem, size = 0x4, offset = 0x4, fixed_abs, tag = 'smem constant byte address 0x4 - core index']
  #allocation1 [shape = 'u32[144,128]{1,0:T(1,128)}', space=vmem, size = 0x12000, scoped, tag = 'internal scratch']
  %s0 = inlined_call_operand.vmem [shape: f32[32,10], index: 0, kind: input, shape index: {}]
  %s1 = inlined_call_operand.vmem [shape: s32[1,32], index: 1, kind: input, shape index: {}]
  %s2 = inlined_call_operand.hbm [shape: f32[1,8,128], index: 2, kind: output, shape index: {}]
  %s3 = sld [smem:[#allocation0]]
  $region18: #{tpu_custom_call.1} parent=0
    _
  %s5 = ssub.s32 1, %s3
  %s6 = scalar_select 0, %s5, %s3
  $region1: #{tpu_custom_call.1} parent=0
    #allocation2 [shape = 'u8[4096]{0}', space=vmem, size = 0x1000, scoped, tag = 'output window, operand 0, single buffered']
    #allocation3 [shape = 's32[1]{0}', space=sflag, size = 0x4, scoped, tag = 'scoped memory for tpu_custom_call.1']
    %7 = vsyncpa [#allocation3], 0
    // Predicated region
    $region2: #{tpu_custom_call.1} parent=1 // pred_check
      _
    $region3: #{tpu_custom_call.1} parent=1 // pred_check_branch
      %9 = sbr.rel (0) target = $region5
    $region4: #{tpu_custom_call.1} parent=1 // pred_region
      _
    $region5: #{tpu_custom_call.1} parent=1 // pred_fallthru
      _
    // Predicated region
    $region6: #{tpu_custom_call.1} parent=1 // pred_check
      _
    $region7: #{tpu_custom_call.1} parent=1 // pred_check_branch
      %11 = sbr.rel (0) target = $region9
    $region8: #{tpu_custom_call.1} parent=1 // pred_region
      _
    $region9: #{tpu_custom_call.1} parent=1 // pred_fallthru
      _
    %v12 = vld [vmem:[%s0] sm:$0xff]
    %v13 = vld [vmem:[%s0 + $0x8] sm:$0xff]
    %v14 = vld [vmem:[%s0 + $0x10] sm:$0xff]
    %v15 = vld [vmem:[%s0 + $0x18] sm:$0xff]
    %16 = vxpose.xlu0.b32.start [1/16] %v12, 128
    %17 = vxpose.xlu0.b32.cont [2/16] %v13, 128
    %18 = vxpose.xlu0.b32.cont [3/16] %v14, 128
    %19 = vxpose.xlu0.b32.cont [4/16] %v15, 128
    %20 = vxpose.xlu0.b32.cont [5/16] 0.0, 128
    %21 = vxpose.xlu0.b32.cont [6/16] 0.0, 128
    %22 = vxpose.xlu0.b32.cont [7/16] 0.0, 128
    %23 = vxpose.xlu0.b32.cont [8/16] 0.0, 128
    %24 = vxpose.xlu0.b32.cont [9/16] 0.0, 128
    %25 = vxpose.xlu0.b32.cont [10/16] 0.0, 128
    %26 = vxpose.xlu0.b32.cont [11/16] 0.0, 128
    %27 = vxpose.xlu0.b32.cont [12/16] 0.0, 128
    %28 = vxpose.xlu0.b32.cont [13/16] 0.0, 128
    %29 = vxpose.xlu0.b32.cont [14/16] 0.0, 128
    %30 = vxpose.xlu0.b32.cont [15/16] 0.0, 128
    %31 = vxpose.xlu0.b32.end [16/16] 0.0, 128
    %v32 = vpop.trf.xlu0
    %v33 = vpop.trf.xlu0
    %v34 = vpop.trf.xlu0
    %v35 = vpop.trf.xlu0
    %v36 = vpop.trf.xlu0
    %v37 = vpop.trf.xlu0
    %v38 = vpop.trf.xlu0
    %v39 = vpop.trf.xlu0
    %v40 = vpop.trf.xlu0
    %v41 = vpop.trf.xlu0
    %v42 = vpop.trf.xlu0
    %v43 = vpop.trf.xlu0
    %v44 = vpop.trf.xlu0
    %v45 = vpop.trf.xlu0
    %v46 = vpop.trf.xlu0
    %v47 = vpop.trf.xlu0
    %v48 = vld [vmem:[%s1] sm:$0x1]
    %vm49 = vcmp.ge.s32.totalorder %v48, 0
    %vm50 = vcmp.lt.s32.totalorder %v48, 10
    %vm51 = vmand %vm49, %vm50
    %s52 = smul.u32 0, 32
    %v53 = vlaneseq
    %v54 = vand.u32 %v53, 127
    %v55 = vstv %s52
    %v56 = vadd.s32 %v55, %v54
    %vm57 = vcmp.lt.s32.totalorder %v56, 32
    %vm58 = vmand %vm51, %vm57
    %vm59 = vcmask 261120
    %v60 = vsel %vm59, %v32, -inf
    %vm61 = vcmask 254976
    %v62 = vsel %vm61, %v33, -inf
    %v63 = vmax.f32 %v60, %v62
    %v64 = vrot.slane %v63, 4
    %v65 = vmax.f32 %v63, %v64
    %v66 = vrot.slane %v65, 2
    %v67 = vmax.f32 %v65, %v66
    %v68 = vrot.slane %v67, 1
    %v69 = vmax.f32 %v67, %v68
    %v70 = vsub.f32 %v32, %v69
    %v71 = vsub.f32 %v33, %v69
    %v72 = vmul.f32 %v70, 1.442695
    %v73 = vpow.pop %v72
    %v74 = vmul.f32 %v71, 1.442695
    %v75 = vpow.pop %v74
    %v76 = vsel %vm59, %v73, 0.0
    %v77 = vsel %vm61, %v75, 0.0
    %v78 = vadd.f32 %v76, %v77
    %v79 = vrot.slane %v78, 4
    %v80 = vadd.f32 %v78, %v79
    %v81 = vrot.slane %v80, 2
    %v82 = vadd.f32 %v80, %v81
    %v83 = vrot.slane %v82, 1
    %v84 = vadd.f32 %v82, %v83
    %v85 = vlog2.pop %v84
    %v86 = vmul.f32 %v85, 0.6931472
    %v87 = vadd.f32 %v69, %v86
    %v88 = vlaneseq
    %v89 = vshrl.u32 %v88, 7
    %v90 = vadd.s32 %v89, 8
    %v91 = vlaneseq
    %v92 = vshrl.u32 %v91, 7
    %v93 = vsub.s32 0, %v92
    %v94 = vrot.slane %v48, %v93
    %vm95 = vcmp.eq.s32.totalorder %v89, %v94
    %vm96 = vcmp.eq.s32.totalorder %v90, %v94
    %v97 = vsel %vm95, %v32, 0.0
    %v98 = vsel %vm96, %v33, 0.0
    %v99 = vsel %vm59, %v97, 0.0
    %v100 = vsel %vm61, %v98, 0.0
    %v101 = vadd.f32 %v99, %v100
    %v102 = vrot.slane %v101, 4
    %v103 = vadd.f32 %v101, %v102
    %v104 = vrot.slane %v103, 2
    %v105 = vadd.f32 %v103, %v104
    %v106 = vrot.slane %v105, 1
    %v107 = vadd.f32 %v105, %v106
    %v108 = vsub.f32 %v87, %v107
    %v109 = vsel %vm58, %v108, 0.0
    %vm110 = vcmask 253952
    %v111 = vsel %vm110, %v109, 0.0
    %112 = vadd.xlane.f32.xlu0 %v111
    %v113 = vpop.xlane.xlu0 %112
    %v114 = vrot.slane %v113, 4
    %v115 = vadd.f32 %v113, %v114
    %v116 = vrot.slane %v115, 2
    %v117 = vadd.f32 %v115, %v116
    %v118 = vrot.slane %v117, 1
    %v119 = vadd.f32 %v117, %v118
    %s120 = vtos %v119
    %v121 = vsel %vm58, 1, 0
    %v122 = vcvt.s32.f32 %v121
    %v123 = vsel %vm110, %v122, 0.0
    %124 = vadd.xlane.f32.xlu0 %v123
    %v125 = vpop.xlane.xlu0 %124
    %v126 = vrot.slane %v125, 4
    %v127 = vadd.f32 %v125, %v126
    %v128 = vrot.slane %v127, 2
    %v129 = vadd.f32 %v127, %v128
    %v130 = vrot.slane %v129, 1
    %v131 = vadd.f32 %v129, %v130
    %s132 = vtos %v131
    %vm133 = vcmp.eq.s32.totalorder %v89, 0
    %vm134 = vcmp.eq.s32.totalorder %v89, 1
    %v135 = vstv %s132
    %v136 = vsel %vm134, %v135, 0.0
    %v137 = vstv %s120
    %v138 = vsel %vm133, %v137, %v136
    %139 = vst [vmem:[#allocation2] sm:$0xff] %v138
    // Predicated region
    $region10: #{tpu_custom_call.1} parent=1 // pred_check
      _
    $region11: #{tpu_custom_call.1} parent=1 // pred_check_branch
      %141 = sbr.rel (0) target = $region13
    $region12: #{tpu_custom_call.1} parent=1 // pred_region
      %s143 = ssub.s32 128, 128
      %144 = vsyncadd [#allocation3], %s143
      %s146 = sshll.u32 [#allocation2], 4
      %s147 = int_to_ptr.vmem [resolvable:$true] %s146
      %149 = dma.vmem_to_hbm [thread:$0]  %s147, 128, %s2, [#allocation3]
    $region13: #{tpu_custom_call.1} parent=1 // pred_fallthru
      _
    // Predicated region
    $region14: #{tpu_custom_call.1} parent=1 // pred_check
      _
    $region15: #{tpu_custom_call.1} parent=1 // pred_check_branch
      %151 = sbr.rel (0) target = $region17
    $region16: #{tpu_custom_call.1} parent=1 // pred_region
      %152 = dma.done [#allocation3], 128
    $region17: #{tpu_custom_call.1} parent=1 // pred_fallthru
      _
    %153 = vsyncpa [#allocation3], 1

</llo_original>
